<compile_context>
chip_gen: v5e
topology: v5e:2x2
jax: 0.10.0
libtpu: 0.0.40
codegen_flags: <defaults>
</compile_context>

<pallas_src>
import jax
import jax.numpy as jnp
from jax.experimental import pallas as pl
from jax.experimental.pallas import tpu as pltpu


def _fourier_kernel(x_ref, f2_ref, phase_ref, o_ref):
    # x_ref: (TN, 1); f2_ref, phase_ref: (1, C) f32; o_ref: (TN, C)
    # Outer product as a VPU broadcast multiply (K=1 matmul would waste the MXU).
    # The sin half is realized as cos(p - pi/2) so the whole (TN, C) tile is one
    # aligned, lane-dense store; the extra mul/add rides in spare VALU slots.
    p = x_ref[...].astype(jnp.float32) * f2_ref[...] + phase_ref[...]
    o_ref[...] = jnp.cos(p).astype(o_ref.dtype)


def _round_up(a, b):
    return (a + b - 1) // b * b


def fourier_embedding(x, freqs, *, block_n=None, vmem_tile_bytes=4 * 1024 * 1024):
    """x: (N,) noise levels / timesteps, freqs: (num_channels//2,) buffer.

    Returns (N, 2*half) = [cos(outer(x, 2*pi*freqs)) | sin(...)], dtype of x.
    """
    assert x.ndim == 1, "FourierEmbedding expects a 1-D input (torch.ger)"
    half = int(freqs.shape[0])
    assert half >= 1
    num_channels = 2 * half
    n = int(x.shape[0])
    out_dtype = x.dtype
    out_itemsize = jnp.dtype(out_dtype).itemsize

    # 2*pi*freqs duplicated across both halves plus a per-lane phase so that
    # sin(p) = cos(p - pi/2); kept in f32 so the cos arguments stay accurate
    # even for low-precision x (final store casts back to out_dtype).
    two_pi_f = (2.0 * jnp.pi) * freqs.astype(jnp.float32)
    f2 = jnp.concatenate([two_pi_f, two_pi_f]).reshape(1, num_channels)
    phase = jnp.concatenate(
        [jnp.zeros((half,), jnp.float32),
         jnp.full((half,), -0.5 * jnp.pi, jnp.float32)]).reshape(1, num_channels)

    if block_n is None:
        # Per-row VMEM bytes per pipeline buffer: one output row plus the x row
        # padded to a full 128-lane f32 vreg row. A ~4 MiB output tile amortizes
        # the ~0.35 us/grid-step overhead while the double-buffered working set
        # (2 x output + 2 x padded-x + freqs) stays well under the tightest
        # scoped-VMEM default (16 MiB on v5e, 32 MiB on v6e/v7x).
        per_row = num_channels * out_itemsize + 128 * 4
        block_n = max(8, (vmem_tile_bytes // max(1, per_row)) // 8 * 8)

    if n <= 8:
        block_n = n                      # block dim == full array dim is legal
    else:
        # Ensure at least 2 grid steps so the "parallel" axis gives both v7x
        # TensorCores work; harmless on single-TensorCore v5e/v6e.
        block_n = min(block_n, _round_up(pl.cdiv(n, 2), 8))
        block_n = max(8, _round_up(block_n, 8))

    grid = (pl.cdiv(n, block_n),)
    cost = pl.CostEstimate(
        flops=2 * n * num_channels,
        transcendentals=n * num_channels,
        bytes_accessed=n * num_channels * out_itemsize
        + n * jnp.dtype(x.dtype).itemsize
        + 2 * num_channels * 4,
    )
    return pl.pallas_call(
        _fourier_kernel,
        out_shape=jax.ShapeDtypeStruct((n, num_channels), out_dtype),
        grid=grid,
        in_specs=[
            pl.BlockSpec((block_n, 1), lambda i: (i, 0)),
            pl.BlockSpec((1, num_channels), lambda i: (0, 0)),  # reused each step
            pl.BlockSpec((1, num_channels), lambda i: (0, 0)),  # reused each step
        ],
        out_specs=pl.BlockSpec((block_n, num_channels), lambda i: (i, 0)),
        compiler_params=pltpu.CompilerParams(
            dimension_semantics=("parallel",)),
        cost_estimate=cost,
    )(x.reshape(n, 1), f2, phase)


def _reference(x, freqs):
    f = (2.0 * jnp.pi) * freqs.astype(x.dtype)
    prod = x[:, None] * f[None, :]
    return jnp.concatenate([jnp.cos(prod), jnp.sin(prod)], axis=1)


if __name__ == "__main__":
    num_channels = 32
    scale = 16.0
    n = 10   # deliberately not a multiple of 8: exercises the ragged last block

    key = jax.random.PRNGKey(0)
    k_f, k_x = jax.random.split(key)
    # Module buffer: randn(num_channels // 2) * scale (registered at init).
    freqs = jax.random.normal(k_f, (num_channels // 2,), dtype=jnp.float32) * scale
    # Input: 1-D vector of conditioning values (what the diffusion model feeds).
    x = jax.random.uniform(k_x, (n,), dtype=jnp.float32)

    out = jax.block_until_ready(fourier_embedding(x, freqs))
    ref = _reference(x, freqs)

    assert out.shape == (n, num_channels)
    max_err = float(jnp.max(jnp.abs(out - ref)))
    assert jnp.allclose(out, ref, atol=3e-4, rtol=3e-4), max_err

    print("KERNEL_OK")
</pallas_src>

<mosaic_0001>
module attributes {stable_mosaic.version = 11 : i64} {
  func.func @_fourier_kernel(%arg0: i32, %arg1: memref<8x1xf32, #tpu.memory_space<vmem>>, %arg2: memref<1x32xf32, #tpu.memory_space<vmem>>, %arg3: memref<1x32xf32, #tpu.memory_space<vmem>>, %arg4: memref<8x32xf32, #tpu.memory_space<vmem>>) attributes {dimension_semantics = [#tpu.dimension_semantics<parallel>], iteration_bounds = array<i64: 2>, scalar_prefetch = 0 : i64, scratch_operands = 0 : i64, tpu.core_type = #tpu.core_type<tc>, window_params = [{transform_indices = @transform_0, window_bounds = array<i64: 8, 1>}, {pipeline_mode = #tpu.pipeline_mode<synchronous>, transform_indices = @transform_1, window_bounds = array<i64: 1, 32>}, {pipeline_mode = #tpu.pipeline_mode<synchronous>, transform_indices = @transform_2, window_bounds = array<i64: 1, 32>}, {transform_indices = @transform_3, window_bounds = array<i64: 8, 32>}]} {
    %c0 = arith.constant 0 : index
    %c0_0 = arith.constant 0 : index
    %0 = vector.load %arg1[%c0, %c0_0] : memref<8x1xf32, #tpu.memory_space<vmem>>, vector<8x1xf32>
    %c0_1 = arith.constant 0 : index
    %c0_2 = arith.constant 0 : index
    %1 = vector.load %arg2[%c0_1, %c0_2] : memref<1x32xf32, #tpu.memory_space<vmem>>, vector<1x32xf32>
    %2 = vector.broadcast %0 : vector<8x1xf32> to vector<8x32xf32>
    %3 = vector.broadcast %1 : vector<1x32xf32> to vector<8x32xf32>
    %4 = arith.mulf %2, %3 : vector<8x32xf32>
    %c0_3 = arith.constant 0 : index
    %c0_4 = arith.constant 0 : index
    %5 = vector.load %arg3[%c0_3, %c0_4] : memref<1x32xf32, #tpu.memory_space<vmem>>, vector<1x32xf32>
    %6 = vector.broadcast %5 : vector<1x32xf32> to vector<8x32xf32>
    %7 = arith.addf %4, %6 : vector<8x32xf32>
    %8 = math.cos %7 : vector<8x32xf32>
    %c0_5 = arith.constant 0 : index
    %c0_6 = arith.constant 0 : index
    %9 = vector.load %arg4[%c0_5, %c0_6] : memref<8x32xf32, #tpu.memory_space<vmem>>, vector<8x32xf32>
    tpu.vector_store %arg4[%c0_5, %c0_6], %8 {strides = array<i32>} : memref<8x32xf32, #tpu.memory_space<vmem>>, vector<8x32xf32>,
    return
  }
  func.func @transform_0(%arg0: i32) -> (i32, i32) {
    %c0_i32 = arith.constant 0 : i32
    %c0_i32_0 = arith.constant 0 : i32
    return %arg0, %c0_i32 : i32, i32
  }
  func.func @transform_1(%arg0: i32) -> (i32, i32) {
    %c0_i32 = arith.constant 0 : i32
    %c0_i32_0 = arith.constant 0 : i32
    %c0_i32_1 = arith.constant 0 : i32
    return %c0_i32, %c0_i32_0 : i32, i32
  }
  func.func @transform_2(%arg0: i32) -> (i32, i32) {
    %c0_i32 = arith.constant 0 : i32
    %c0_i32_0 = arith.constant 0 : i32
    %c0_i32_1 = arith.constant 0 : i32
    return %c0_i32, %c0_i32_0 : i32, i32
  }
  func.func @transform_3(%arg0: i32) -> (i32, i32) {
    %c0_i32 = arith.constant 0 : i32
    %c0_i32_0 = arith.constant 0 : i32
    return %arg0, %c0_i32 : i32, i32
  }
}

</mosaic_0001>

<llo_original>
// kernel: tpu_custom_call.1
$region0: #{tpu_custom_call.1}
  #allocation0 [shape = 'u32[]', space=smem, size = 0x4, offset = 0x4, fixed_abs, tag = 'smem constant byte address 0x4 - core index']
  #allocation1 [shape = 'u32[72,128]{1,0:T(1,128)}', space=vmem, size = 0x9000, scoped, tag = 'internal scratch']
  %s0 = inlined_call_operand.vmem [shape: f32[10,1], index: 0, kind: input, shape index: {}]
  %s1 = inlined_call_operand.vmem [shape: f32[1,32], index: 1, kind: input, shape index: {}]
  %s2 = inlined_call_operand.vmem [shape: f32[1,32], index: 2, kind: input, shape index: {}]
  %s3 = inlined_call_operand.hbm [shape: f32[10,32], index: 3, kind: output, shape index: {}]
  %s4 = sld [smem:[#allocation0]]
  $region45: #{tpu_custom_call.1} parent=0
    _
  %s6 = ssub.s32 1, %s4
  %s7 = scalar_select 0, %s6, %s4
  $region1: #{tpu_custom_call.1} parent=0
    #allocation2 [shape = 'u8[8192]{0}', space=vmem, size = 0x2000, scoped, tag = 'output window, operand 0']
    #allocation3 [shape = 's32[2]{0}', space=sflag, size = 0x8, scoped, tag = 'scoped memory for tpu_custom_call.1']
    %8 = vsyncpa [#allocation3], 0
    %s9 = scalar_lea.sflag [#allocation3], 1
    %10 = vsyncpa %s9, 0
    loop: start=0, step=1, limit=4
    $region2: #{tpu_custom_call.1} parent=1 // loop_pre_header
      _
    $region3: #{tpu_custom_call.1} parent=1 // loop_header
      %s12 = sphi 0, %s16
      %p13 = scmp.ge.s32.totalorder %s12, 4
      %s22 = sphi 0, %s24
      %s25 = sphi 0, %s22
      %s26 = sphi 0, %s25
      %s42 = sphi 0, %s26
      %s46 = sphi 0, %s46
      %s48 = sphi 0, %s46
      %s49 = sphi 0, %s48
      %s63 = sphi 0, %s49
      %s67 = sphi 0, %s67
      %s69 = sphi 0, %s67
      %s70 = sphi 0, %s69
      %s84 = sphi 0, %s70
      %s90 = sphi 0, %s92
      %s93 = sphi 0, %s90
      %s94 = sphi 0, %s93
      %s110 = sphi 0, %s94
    $region4: #{tpu_custom_call.1} parent=1 // loop_header_branch
      %15 = sbr.rel (%p13) target = $region8
    $region5: #{tpu_custom_call.1} parent=1 // loop_body
      %s17 = ssub.s32 %s12, 1
      %s18 = ssub.s32 %s12, 2
      %s19 = sadd.s32 %s12, 1
      %s20 = ssub.s32 %s12, %s19
      %p21 = scmp.eq.s32.totalorder %s20, 0
      %s23 = sadd.s32 %s22, 1
      %s24 = scalar_select %p21, %s22, %s23
      %p27 = pneg %p21
      %p28 = scmp.eq.s32.totalorder %s12, 1
      %p29 = por %p27, %p28
      %p30 = scmp.ne.s32.totalorder %s22, %s25
      %p31 = scmp.eq.s32.totalorder %s12, 0
      %p32 = por %p30, %p31
      %p33 = scmp.ne.s32.totalorder %s22, %s25
      %p34 = scmp.eq.s32.totalorder %s17, 1
      %p35 = por %p33, %p34
      %p36 = scmp.ne.s32.totalorder %s25, %s26
      %p37 = scmp.eq.s32.totalorder %s17, 0
      %p38 = por %p36, %p37
      %p39 = scmp.ne.s32.totalorder %s25, %s26
      %p40 = scmp.eq.s32.totalorder %s18, 1
      %p41 = por %p39, %p40
      %p43 = scmp.ne.s32.totalorder %s26, %s42
      %p44 = scmp.eq.s32.totalorder %s18, 0
      %p45 = por %p43, %p44
      %s47 = sadd.s32 %s46, 1
      %p50 = scmp.eq.s32.totalorder %s12, 1
      %p51 = scmp.ne.s32.totalorder %s46, %s48
      %p52 = scmp.eq.s32.totalorder %s12, 0
      %p53 = por %p51, %p52
      %p54 = scmp.ne.s32.totalorder %s46, %s48
      %p55 = scmp.eq.s32.totalorder %s17, 1
      %p56 = por %p54, %p55
      %p57 = scmp.ne.s32.totalorder %s48, %s49
      %p58 = scmp.eq.s32.totalorder %s17, 0
      %p59 = por %p57, %p58
      %p60 = scmp.ne.s32.totalorder %s48, %s49
      %p61 = scmp.eq.s32.totalorder %s18, 1
      %p62 = por %p60, %p61
      %p64 = scmp.ne.s32.totalorder %s49, %s63
      %p65 = scmp.eq.s32.totalorder %s18, 0
      %p66 = por %p64, %p65
      %s68 = sadd.s32 %s67, 1
      %p71 = scmp.eq.s32.totalorder %s12, 1
      %p72 = scmp.ne.s32.totalorder %s67, %s69
      %p73 = scmp.eq.s32.totalorder %s12, 0
      %p74 = por %p72, %p73
      %p75 = scmp.ne.s32.totalorder %s67, %s69
      %p76 = scmp.eq.s32.totalorder %s17, 1
      %p77 = por %p75, %p76
      %p78 = scmp.ne.s32.totalorder %s69, %s70
      %p79 = scmp.eq.s32.totalorder %s17, 0
      %p80 = por %p78, %p79
      %p81 = scmp.ne.s32.totalorder %s69, %s70
      %p82 = scmp.eq.s32.totalorder %s18, 1
      %p83 = por %p81, %p82
      %p85 = scmp.ne.s32.totalorder %s70, %s84
      %p86 = scmp.eq.s32.totalorder %s18, 0
      %p87 = por %p85, %p86
      %s88 = ssub.s32 %s12, %s19
      %p89 = scmp.eq.s32.totalorder %s88, 0
      %s91 = sadd.s32 %s90, 1
      %s92 = scalar_select %p89, %s90, %s91
      %p95 = pneg %p89
      %p96 = scmp.eq.s32.totalorder %s12, 1
      %p97 = por %p95, %p96
      %p98 = scmp.ne.s32.totalorder %s90, %s93
      %p99 = scmp.eq.s32.totalorder %s12, 0
      %p100 = por %p98, %p99
      %p101 = scmp.ne.s32.totalorder %s90, %s93
      %p102 = scmp.eq.s32.totalorder %s17, 1
      %p103 = por %p101, %p102
      %p104 = scmp.ne.s32.totalorder %s93, %s94
      %p105 = scmp.eq.s32.totalorder %s17, 0
      %p106 = por %p104, %p105
      %p107 = scmp.ne.s32.totalorder %s93, %s94
      %p108 = scmp.eq.s32.totalorder %s18, 1
      %p109 = por %p107, %p108
      %p111 = scmp.ne.s32.totalorder %s94, %s110
      %p112 = scmp.eq.s32.totalorder %s18, 0
      %p113 = por %p111, %p112
      %p114 = scmp.le.s32.totalorder 1, %s12
      %p115 = scmp.lt.s32.totalorder %s12, 3
      %p116 = pnand %p114, %p115
      %p117 = pneg %p116
      // Predicated region
      $region9: #{tpu_custom_call.1} parent=5 // pred_check
        _
      $region10: #{tpu_custom_call.1} parent=5 // pred_check_branch
        %119 = sbr.rel (%p116) target = $region12
      $region11: #{tpu_custom_call.1} parent=5 // pred_region
        %s120 = ssub.s32 %s12, 1
        // Predicated region
        $region13: #{tpu_custom_call.1} parent=11 // pred_check
          %p121 = pneg %p59
        $region14: #{tpu_custom_call.1} parent=11 // pred_check_branch
          %123 = sbr.rel (%p121) target = $region16
        $region15: #{tpu_custom_call.1} parent=11 // pred_region
          _
        $region16: #{tpu_custom_call.1} parent=11 // pred_fallthru
          _
        // Predicated region
        $region17: #{tpu_custom_call.1} parent=11 // pred_check
          %p124 = pneg %p80
        $region18: #{tpu_custom_call.1} parent=11 // pred_check_branch
          %126 = sbr.rel (%p124) target = $region20
        $region19: #{tpu_custom_call.1} parent=11 // pred_region
          _
        $region20: #{tpu_custom_call.1} parent=11 // pred_fallthru
          _
      $region12: #{tpu_custom_call.1} parent=5 // pred_fallthru
        _
      %p127 = scmp.lt.s32.totalorder %s12, 2
      // Predicated region
      $region21: #{tpu_custom_call.1} parent=5 // pred_check
        %p128 = pneg %p127
      $region22: #{tpu_custom_call.1} parent=5 // pred_check_branch
        %130 = sbr.rel (%p128) target = $region24
      $region23: #{tpu_custom_call.1} parent=5 // pred_region
        // Predicated region
        $region25: #{tpu_custom_call.1} parent=23 // pred_check
          %p131 = pneg %p32
        $region26: #{tpu_custom_call.1} parent=23 // pred_check_branch
          %133 = sbr.rel (%p131) target = $region28
        $region27: #{tpu_custom_call.1} parent=23 // pred_region
          %p134 = scmp.lt.s32.totalorder %s12, 1
          %s135 = scalar_select %p134, %s12, 1
          %s136 = smul.addr %s135, 8
          %s137 = scalar_lea.vmem %s0, %s136
        $region28: #{tpu_custom_call.1} parent=23 // pred_fallthru
          _
      $region24: #{tpu_custom_call.1} parent=5 // pred_fallthru
        _
      %p138 = scmp.le.s32.totalorder 1, %s12
      %p139 = scmp.lt.s32.totalorder %s12, 3
      %p140 = pnand %p138, %p139
      %p141 = pneg %p140
      // Predicated region
      $region29: #{tpu_custom_call.1} parent=5 // pred_check
        _
      $region30: #{tpu_custom_call.1} parent=5 // pred_check_branch
        %143 = sbr.rel (%p140) target = $region32
      $region31: #{tpu_custom_call.1} parent=5 // pred_region
        %s144 = ssub.s32 %s12, 1
        %p145 = scmp.lt.s32.totalorder %s17, 1
        %s146 = scalar_select %p145, %s17, 1
        %s147 = smul.addr %s146, 8
        %s148 = scalar_lea.vmem %s0, %s147
        %p149 = pneg %p38
        %p150 = pneg %p35
        %p151 = pneg %p59
        %p152 = pneg %p56
        %p153 = pneg %p80
        %p154 = pneg %p77
        %p155 = pneg %p106
        %p156 = pneg %p103
        %s157 = sand.u32 %s93, 1
        %s158 = scalar_lea.sflag [#allocation3], %s157
        %s159 = sand.u32 %s93, 1
        %s160 = smul.addr %s159, 8
        %s161 = scalar_lea.vmem [#allocation2], %s160
        %p162 = scmp.lt.s32.totalorder %s17, 1
        %s163 = scalar_select %p162, %s17, 1
        %s164 = smul.addr %s163, 8
        %s165 = scalar_lea.vmem %s0, %s164
        %v166 = vld [vmem:[%s165] sm:$0xff]
        %v167 = vld [vmem:[%s1] sm:$0x1]
        %169 = vset.pattern.permute.xlu0 0
        %170 = vperm.xlu0 %169, %v166
        %v171 = vpop.permute.xlu0 %170
        %v174 = vperm.slane %v167, 0
        %v176 = vmul.f32 %v171, %v174
        %v177 = vld [vmem:[%s2] sm:$0x1]
        %v179 = vperm.slane %v177, 0
        %v181 = vadd.f32 %v176, %v179
        %v182 = vand.u32 2147483647, %v181
        %vm183 = vcmp.le.f32.partialorder %v182, 0.7853982
        %vm184 = vcmp.lt.s32.totalorder %v181, 0
        %v185 = vand.u32 %v181, 2139095040
        %v186 = vshrl.u32 %v185, 23
        %v187 = vsub.s32 %v186, 127
        %v188 = vand.u32 2147483647, %v181
        %v189 = vand.u32 %v188, 8388607
        %v190 = vor.u32 %v189, 8388608
        %v191 = vsub.s32 0, %v190
        %v192 = vadd.s32 %v187, 1
        %vm193 = vcmp.gt.s32.totalorder %v192, 0
        %v194 = vsel %vm193, %v192, 0
        %v195 = vshrl.u32 %v194, 5
        %v196 = vand.u32 %v194, 31
        %v197 = vsub.s32 32, %v196
        %v198 = vshrl.u32 683565275, %v197
        %v199 = vshll.u32 683565275, %v196
        %v200 = vshrl.u32 2475754826, %v197
        %v201 = vor.u32 %v199, %v200
        %v202 = vshll.u32 2475754826, %v196
        %v203 = vshrl.u32 2131351028, %v197
        %v204 = vor.u32 %v202, %v203
        %v205 = vshll.u32 2131351028, %v196
        %v206 = vshrl.u32 2102212464, %v197
        %v207 = vor.u32 %v205, %v206
        %v208 = vshll.u32 2102212464, %v196
        %v209 = vshrl.u32 920167782, %v197
        %v210 = vor.u32 %v208, %v209
        %v211 = vshll.u32 920167782, %v196
        %v212 = vshrl.u32 1326507024, %v197
        %v213 = vor.u32 %v211, %v212
        %vm214 = vcmp.lt.s32.totalorder %v195, 1
        %vm215 = vcmp.lt.s32.totalorder %v195, 2
        %vm216 = vcmp.lt.s32.totalorder %v195, 3
        %vm217 = vcmp.lt.s32.totalorder %v195, 4
        %v218 = vsel %vm214, %v198, %v201
        %v219 = vsel %vm217, %v207, 2102212464
        %v220 = vsel %vm216, %v204, %v219
        %v221 = vsel %vm215, %v218, %v220
        %v222 = vsel %vm214, %v201, %v204
        %v223 = vsel %vm217, %v210, 920167782
        %v224 = vsel %vm216, %v207, %v223
        %v225 = vsel %vm215, %v222, %v224
        %v226 = vsel %vm214, %v204, %v207
        %v227 = vsel %vm217, %v213, 1326507024
        %v228 = vsel %vm216, %v210, %v227
        %v229 = vsel %vm215, %v226, %v228
        %v230 = vshll.u32 %v190, 8
        %v231 = vand.u32 %v230, 65535
        %v232 = vshrl.u32 %v230, 16
        %v233 = vand.u32 %v229, 65535
        %v234 = vshrl.u32 %v229, 16
        %v235 = vmul.u32 %v231, %v233
        %v236 = vmul.u32 %v231, %v234
        %v237 = vmul.u32 %v232, %v233
        %v238 = vmul.u32 %v232, %v234
        %v239 = vshll.u32 %v236, 16
        %v240 = vshrl.u32 %v236, 16
        %v241 = vshll.u32 %v237, 16
        %v242 = vshrl.u32 %v237, 16
        %vm243 = vc.u32 %v235, %v239
        %v244 = vsel %vm243, 1, 0
        %v245 = vadd.s32 %v235, %v239
        %v246 = vadd.s32 %v238, %v244
        %vm247 = vc.u32 %v245, %v241
        %v248 = vsel %vm247, 1, 0
        %v249 = vadd.s32 %v245, %v241
        %v250 = vadd.s32 %v246, %v248
        %v251 = vadd.s32 %v250, %v240
        %v252 = vadd.s32 %v251, %v242
        %v253 = vand.u32 %v230, 65535
        %v254 = vshrl.u32 %v230, 16
        %v255 = vand.u32 %v225, 65535
        %v256 = vshrl.u32 %v225, 16
        %v257 = vmul.u32 %v253, %v255
        %v258 = vmul.u32 %v253, %v256
        %v259 = vmul.u32 %v254, %v255
        %v260 = vmul.u32 %v254, %v256
        %v261 = vshll.u32 %v258, 16
        %v262 = vshrl.u32 %v258, 16
        %v263 = vshll.u32 %v259, 16
        %v264 = vshrl.u32 %v259, 16
        %vm265 = vc.u32 %v257, %v261
        %v266 = vsel %vm265, 1, 0
        %v267 = vadd.s32 %v257, %v261
        %v268 = vadd.s32 %v260, %v266
        %vm269 = vc.u32 %v267, %v263
        %v270 = vsel %vm269, 1, 0
        %v271 = vadd.s32 %v267, %v263
        %v272 = vadd.s32 %v268, %v270
        %v273 = vadd.s32 %v272, %v262
        %v274 = vadd.s32 %v273, %v264
        %v275 = vmul.u32 %v230, %v221
        %v276 = vadd.s32 %v252, %v271
        %vm277 = vc.u32 %v252, %v271
        %v278 = vadd.s32 %v274, 1
        %v279 = vsel %vm277, %v278, %v274
        %v280 = vadd.s32 %v275, %v279
        %v281 = vadd.s32 %v280, 536870912
        %v282 = vshrl.u32 %v281, 30
        %v283 = vshll.u32 %v282, 30
        %v284 = vsub.s32 %v280, %v283
        %vm285 = vcmp.lt.s32.totalorder %v284, 0
        %v286 = vsub.s32 0, %v284
        %v287 = vsel %vm285, %v286, %v284
        %v288 = vclz %v287
        %v289 = vsub.s32 %v288, 2
        %vm290 = vcmp.gt.s32.totalorder 0, %v289
        %v291 = vsel %vm290, 0, %v289
        %v292 = vsub.s32 32, %v291
        %v293 = vshll.u32 %v284, %v291
        %v294 = vshrl.u32 %v276, %v292
        %v295 = vor.u32 %v293, %v294
        %v296 = vsub.s32 4294967266, %v291
        %v297 = vadd.s32 %v296, 127
        %v298 = vshll.u32 %v297, 23
        %v299 = vor.u32 4788187, %v298
        %v300 = vand.u32 2147483647, %v299
        %v302 = vcvt.s32.f32 %v295
        %v303 = vmul.f32 %v302, %v300
        %v304 = vxor.u32 %v303, 2147483648
        %v305 = vsel %vm184, %v304, %v303
        %v306 = vsub.s32 4, %v282
        %v307 = vsel %vm184, %v306, %v282
        %v308 = vsel %vm183, %v181, %v305
        %v309 = vsel %vm183, 0, %v307
        %v310 = vmul.f32 %v308, %v308
        %v311 = vmul.f32 %v310, -0.001358992
        %v312 = vadd.f32 %v311, 0.041655596
        %v313 = vmul.f32 %v310, %v312
        %v314 = vadd.f32 %v313, -0.4999988
        %v315 = vmul.f32 %v310, %v314
        %v316 = vadd.f32 1.0, %v315
        %v317 = vmul.f32 %v308, %v308
        %v318 = vmul.f32 %v317, -0.00019511016
        %v319 = vadd.f32 %v318, 0.008332121
        %v320 = vmul.f32 %v317, %v319
        %v321 = vadd.f32 %v320, -0.16666654
        %v322 = vmul.f32 %v317, %v321
        %v323 = vadd.f32 %v322, 1.0
        %v324 = vmul.f32 %v323, %v308
        %vm325 = vweird.f32 %v181
        %v326 = vand.u32 %v309, 3
        %vm327 = vcmp.lt.s32.totalorder %v326, 2
        %vm328 = vcmp.eq.s32.totalorder %v326, 0
        %v329 = vxor.u32 %v324, 2147483648
        %v330 = vsel %vm328, %v316, %v329
        %vm331 = vcmp.eq.s32.totalorder %v326, 2
        %v332 = vxor.u32 %v316, 2147483648
        %v333 = vsel %vm331, %v332, %v324
        %v334 = vsel %vm327, %v330, %v333
        %v335 = vsel %vm325, nan, %v334
        %vm336 = vcmask 261120
        %337 = vst.msk [vmem:[%s161] sm:$0xff] %vm336, %v335
        %s338 = sand.u32 %s93, 1
        %s339 = scalar_lea.sflag [#allocation3], %s338
        %s340 = sand.u32 %s93, 1
        %s341 = smul.addr %s340, 8
        %s342 = scalar_lea.vmem [#allocation2], %s341
        // Predicated region
        $region33: #{tpu_custom_call.1} parent=31 // pred_check
          %p343 = pneg %p103
        $region34: #{tpu_custom_call.1} parent=31 // pred_check_branch
          %345 = sbr.rel (%p343) target = $region36
        $region35: #{tpu_custom_call.1} parent=31 // pred_region
          %347 = vsyncadd %s339, 0
          %s348 = smul.addr %s17, 8
          %s349 = scalar_lea.hbm %s3, %s348
          %s351 = sshll.u32 %s342, 4
          %s352 = int_to_ptr.vmem [resolvable:$true] %s351
          %s353 = sshll.u32 %s349, 4
          %s354 = int_to_ptr.hbm [resolvable:$true] %s353
          %356 = dma.vmem_to_hbm [thread:$0]  %s352, 128, %s354, %s339
        $region36: #{tpu_custom_call.1} parent=31 // pred_fallthru
          _
      $region32: #{tpu_custom_call.1} parent=5 // pred_fallthru
        _
      %p357 = scmp.le.s32.totalorder 2, %s12
      // Predicated region
      $region37: #{tpu_custom_call.1} parent=5 // pred_check
        %p358 = pneg %p357
      $region38: #{tpu_custom_call.1} parent=5 // pred_check_branch
        %360 = sbr.rel (%p358) target = $region40
      $region39: #{tpu_custom_call.1} parent=5 // pred_region
        %s361 = ssub.s32 %s12, 2
        // Predicated region
        $region41: #{tpu_custom_call.1} parent=39 // pred_check
          %p362 = pneg %p109
        $region42: #{tpu_custom_call.1} parent=39 // pred_check_branch
          %364 = sbr.rel (%p362) target = $region44
        $region43: #{tpu_custom_call.1} parent=39 // pred_region
          %s365 = sand.u32 %s94, 1
          %s366 = scalar_lea.sflag [#allocation3], %s365
          %s367 = sand.u32 %s94, 1
          %s368 = smul.addr %s367, 8
          %s369 = scalar_lea.vmem [#allocation2], %s368
          %371 = dma.done %s366, 128
        $region44: #{tpu_custom_call.1} parent=39 // pred_fallthru
          _
      $region40: #{tpu_custom_call.1} parent=5 // pred_fallthru
        _
    $region6: #{tpu_custom_call.1} parent=1 // loop_footer
      %s16 = sadd.s32 1, %s12
    $region7: #{tpu_custom_call.1} parent=1 // loop_footer_branch
      %11 = sbr.rel target = $region3
    $region8: #{tpu_custom_call.1} parent=1 // loop_exit
      _
    %372 = vsyncpa [#allocation3], 1
    %s373 = scalar_lea.sflag [#allocation3], 1
    %374 = vsyncpa %s373, 1

</llo_original>
